<compile_context>
chip_gen: v6e
topology: v6e:2x2x1
jax: 0.10.0
libtpu: 0.0.40
codegen_flags: <defaults>
</compile_context>

<pallas_src>
import jax
import jax.numpy as jnp
from jax.experimental import pallas as pl
from jax.experimental.pallas import tpu as pltpu


def mlp_kernel(x_ref, w1_ref, b1_ref, w2_ref, b2_ref, o_ref):
    # linear1 on the MXU: in-kernel bf16 cast (VPU work hidden under the x DMA), f32 accumulation.
    x_bf = x_ref[...].astype(jnp.bfloat16)                        # [TILE_B, D]
    h = jnp.dot(x_bf, w1_ref[...], preferred_element_type=jnp.float32)   # [TILE_B, H_pad] f32
    # bias + ReLU on the VPU (f32).
    h = jnp.maximum(h + b1_ref[...], 0.0)
    # linear2 has N=1: VPU multiply + cross-lane (XLU) reduce. The MXU alternative
    # (lax.dot_general on w2/h) only pays off if the VPU/XLU slots become the binding unit;
    # this kernel is HBM-bound on streaming x, so they have slack.
    logits = jnp.sum(h * w2_ref[...], axis=-1) + b2_ref[0]        # [TILE_B]
    # Lane-dense, (8,128)-aligned store: TILE_B sigmoids as a (TILE_B//128, 128) block.
    o_ref[...] = jax.nn.sigmoid(logits).reshape(o_ref.shape)


def _round_up(n, m):
    return ((n + m - 1) // m) * m


def _vmem_limit_bytes():
    # Generation-aware VMEM limit: ~75% of physical (~48 MiB on v7x, ~96 MiB on v5e/v6e).
    cap = 64 * 1024 * 1024
    try:
        cap = int(getattr(pltpu.get_tpu_info(), "vmem_capacity_bytes", cap)) or cap
    except Exception:
        pass  # fall back to the conservative 64 MiB (v7x) figure
    return (cap * 3) // 4


def _choose_tile_b(B, D, H_pad, vmem_limit_bytes):
    """Pick the batch tile. Returns (tile_b, b_pad) with b_pad % tile_b == 0."""
    LANE = 128
    ALIGN = 8 * LANE  # 1024 rows -> every (TILE_B//128, 128) output block is (8,128)-aligned

    if B <= ALIGN:
        # Single tile == the full (padded) array, so only 128-row alignment is required.
        tile = _round_up(B, LANE)
        return tile, tile

    # VMEM-budget-driven tile size: stream as much x per grid step as fits.
    # Per batch-row bytes: x f32 (double-buffered) + in-kernel bf16 copy of x
    #                      + h f32 (x2 for elementwise temps) + out f32 (double-buffered).
    per_row = 2 * 4 * D + 2 * D + 2 * 4 * H_pad + 2 * 4
    # Residents: single-buffered bf16 w1, f32 b1/w2, plus slack for compiler temporaries.
    fixed = 2 * D * H_pad + 2 * 4 * H_pad + (4 << 20)
    usable = max((vmem_limit_bytes * 3) // 4 - fixed, ALIGN * per_row)
    max_rows = min(usable // per_row, 32 * 1024, _round_up(B, ALIGN))

    tile = ALIGN
    while tile * 2 <= max_rows:
        tile *= 2  # power-of-two tiles divide power-of-two batches -> no x pad copy needed

    # Keep >= 2 grid steps when the batch is big enough so dimension_semantics=("parallel",)
    # can split the batch across both TensorCores on v7x (harmless on 1-TC v5e/v6e).
    if _round_up(B, tile) == tile and tile >= 2 * ALIGN:
        tile //= 2

    return tile, _round_up(B, tile)


def prepare_params(w1, b1, w2, b2):
    """One-time parameter prep (pad H to 128 lanes, cast w1 to bf16). Cacheable by callers."""
    D, H = w1.shape
    H_pad = _round_up(H, 128)
    # Zero-padding the hidden dim is an exact no-op: relu(0 + 0) = 0 and 0 * 0 = 0.
    w1_p = jnp.zeros((D, H_pad), jnp.bfloat16).at[:, :H].set(w1.astype(jnp.bfloat16))
    b1_p = jnp.zeros((1, H_pad), jnp.float32).at[:, :H].set(b1.reshape(1, H).astype(jnp.float32))
    w2_p = jnp.zeros((1, H_pad), jnp.float32).at[:, :H].set(w2.reshape(1, H).astype(jnp.float32))
    b2_s = b2.reshape(1).astype(jnp.float32)
    return w1_p, b1_p, w2_p, b2_s


def neural_net1_forward_prepared(x, params):
    w1_p, b1_p, w2_p, b2_s = params
    B, D = x.shape
    H_pad = w1_p.shape[1]

    vmem_limit = _vmem_limit_bytes()
    tile_b, b_pad = _choose_tile_b(B, D, H_pad, vmem_limit)
    num_tiles = b_pad // tile_b
    rows_per_tile = tile_b // 128

    # x is streamed unpadded & uncast (bf16 cast happens in-kernel). Pad only when the batch
    # does not divide into tiles; padded rows produce throwaway outputs sliced off below.
    x_in = x if b_pad == B else jnp.zeros((b_pad, D), x.dtype).at[:B].set(x)

    # TODO(synk): once bf16 w1 (2*D*H_pad bytes) exceeds ~1/3 of vmem_limit (i.e. ~16-24 MiB on
    # v7x, ~40-56 MiB on v5e/v6e), add a K-reduction grid axis ("arbitrary", last) with an f32
    # VMEM accumulator and pl.when init/epilogue instead of keeping w1 fully resident.
    out = pl.pallas_call(
        mlp_kernel,
        out_shape=jax.ShapeDtypeStruct((b_pad // 128, 128), jnp.float32),
        grid=(num_tiles,),
        in_specs=[
            pl.BlockSpec((tile_b, D), lambda i: (i, 0)),        # x: streamed batch tiles
            # Constant-index weights: whole array resident in VMEM (single copy, no
            # per-step DMA, no double buffering).
            pl.BlockSpec(memory_space=pltpu.MemorySpace.VMEM),  # w1 (bf16, [D, H_pad])
            pl.BlockSpec(memory_space=pltpu.MemorySpace.VMEM),  # b1 (f32, [1, H_pad])
            pl.BlockSpec(memory_space=pltpu.MemorySpace.VMEM),  # w2 as a row (f32, [1, H_pad])
            pl.BlockSpec(memory_space=pltpu.MemorySpace.SMEM),  # b2 scalar
        ],
        # (8,128)-aligned, lane-dense output slab: block rows = tile_b//128 (multiple of 8
        # whenever num_tiles > 1; equals the full array when num_tiles == 1).
        out_specs=pl.BlockSpec((rows_per_tile, 128), lambda i: (i, 0)),
        compiler_params=pltpu.CompilerParams(
            dimension_semantics=("parallel",),                  # megacore sharding on v7x
            vmem_limit_bytes=vmem_limit,
        ),
    )(x_in, w1_p, b1_p, w2_p, b2_s)

    # Free layout plumbing: row-major slab flatten == batch order; slice off batch padding.
    return out.reshape(-1)[:B][:, None]


def neural_net1_forward(x, w1, b1, w2, b2):
    """x: [B, D], w1: [D, H], b1: [1, H], w2: [H, 1], b2: [1, 1] -> sigmoid(relu(x@w1+b1)@w2+b2)."""
    return neural_net1_forward_prepared(x, prepare_params(w1, b1, w2, b2))


def init_params(key, input_size, hidden_size):
    # Deterministic init mimicking nn.Linear: U(-1/sqrt(fan_in), 1/sqrt(fan_in)).
    k1, k2, k3, k4 = jax.random.split(key, 4)
    bound1 = 1.0 / jnp.sqrt(input_size)
    bound2 = 1.0 / jnp.sqrt(hidden_size)
    w1 = jax.random.uniform(k1, (input_size, hidden_size), jnp.float32, -bound1, bound1)
    b1 = jax.random.uniform(k2, (1, hidden_size), jnp.float32, -bound1, bound1)
    w2 = jax.random.uniform(k3, (hidden_size, 1), jnp.float32, -bound2, bound2)
    b2 = jax.random.uniform(k4, (1, 1), jnp.float32, -bound2, bound2)
    return w1, b1, w2, b2


if __name__ == "__main__":
    key = jax.random.PRNGKey(0)
    kx, kp = jax.random.split(key)

    batch, input_size, hidden_size = 8, 32, 64
    x = jax.random.normal(kx, (batch, input_size), dtype=jnp.float32)
    w1, b1, w2, b2 = init_params(kp, input_size, hidden_size)

    y_pred = neural_net1_forward(x, w1, b1, w2, b2)
    jax.block_until_ready(y_pred)

    # Reference check in plain JAX (f32); the kernel uses bf16 for the first matmul,
    # so compare with a bf16-appropriate tolerance.
    h_ref = jnp.maximum(x @ w1 + b1, 0.0)
    y_ref = jax.nn.sigmoid(h_ref @ w2 + b2)
    assert y_pred.shape == (batch, 1)
    assert jnp.allclose(y_pred, y_ref, atol=2e-2, rtol=2e-2)

    print("KERNEL_OK")
</pallas_src>

<mosaic_0001>
module attributes {stable_mosaic.version = 11 : i64} {
  func.func @mlp_kernel(%arg0: i32, %arg1: memref<128x32xf32, #tpu.memory_space<vmem>>, %arg2: memref<32x128xbf16, #tpu.memory_space<vmem>>, %arg3: memref<1x128xf32, #tpu.memory_space<vmem>>, %arg4: memref<1x128xf32, #tpu.memory_space<vmem>>, %arg5: memref<1xf32, #tpu.memory_space<smem>>, %arg6: memref<1x128xf32, #tpu.memory_space<vmem>>) attributes {dimension_semantics = [#tpu.dimension_semantics<parallel>], iteration_bounds = array<i64: 1>, scalar_prefetch = 0 : i64, scratch_operands = 0 : i64, tpu.core_type = #tpu.core_type<tc>, window_params = [{transform_indices = @transform_0, window_bounds = array<i64: 128, 32>}, {pipeline_mode = #tpu.pipeline_mode<synchronous>, transform_indices = @transform_1, window_bounds = array<i64: 32, 128>}, {pipeline_mode = #tpu.pipeline_mode<synchronous>, transform_indices = @transform_2, window_bounds = array<i64: 1, 128>}, {pipeline_mode = #tpu.pipeline_mode<synchronous>, transform_indices = @transform_3, window_bounds = array<i64: 1, 128>}, {transform_indices = @transform_4, window_bounds = array<i64: 1>}, {transform_indices = @transform_5, window_bounds = array<i64: 1, 128>}]} {
    %c0 = arith.constant 0 : index
    %c0_0 = arith.constant 0 : index
    %0 = vector.load %arg1[%c0, %c0_0] : memref<128x32xf32, #tpu.memory_space<vmem>>, vector<128x32xf32>
    %1 = arith.truncf %0 : vector<128x32xf32> to vector<128x32xbf16>
    %c0_1 = arith.constant 0 : index
    %c0_2 = arith.constant 0 : index
    %2 = vector.load %arg2[%c0_1, %c0_2] : memref<32x128xbf16, #tpu.memory_space<vmem>>, vector<32x128xbf16>
    %cst = arith.constant dense<0.000000e+00> : vector<128x128xf32>
    %3 = tpu.matmul %1, %2, %cst {dimension_numbers = #tpu.dot_dimension_numbers<[1], [0], [0], [1], [0, 0, 1, 1], [], []>} : vector<128x32xbf16>, vector<32x128xbf16>, vector<128x128xf32> -> vector<128x128xf32>
    %c0_3 = arith.constant 0 : index
    %c0_4 = arith.constant 0 : index
    %4 = vector.load %arg3[%c0_3, %c0_4] : memref<1x128xf32, #tpu.memory_space<vmem>>, vector<1x128xf32>
    %5 = vector.broadcast %4 : vector<1x128xf32> to vector<128x128xf32>
    %6 = arith.addf %3, %5 : vector<128x128xf32>
    %cst_5 = arith.constant 0.000000e+00 : f32
    %7 = vector.broadcast %cst_5 : f32 to vector<128x128xf32>
    %8 = arith.maximumf %6, %7 : vector<128x128xf32>
    %c0_6 = arith.constant 0 : index
    %c0_7 = arith.constant 0 : index
    %9 = vector.load %arg4[%c0_6, %c0_7] : memref<1x128xf32, #tpu.memory_space<vmem>>, vector<1x128xf32>
    %10 = vector.broadcast %9 : vector<1x128xf32> to vector<128x128xf32>
    %11 = arith.mulf %8, %10 : vector<128x128xf32>
    %cst_8 = arith.constant dense<0.000000e+00> : vector<128xf32>
    %12 = vector.multi_reduction <add>, %11, %cst_8 [1] : vector<128x128xf32> to vector<128xf32>
    %c0_9 = arith.constant 0 : index
    %13 = memref.load %arg5[%c0_9] : memref<1xf32, #tpu.memory_space<smem>>
    %14 = vector.broadcast %13 : f32 to vector<128xf32>
    %15 = arith.addf %12, %14 : vector<128xf32>
    %16 = arith.negf %15 : vector<128xf32>
    %17 = math.exp %16 : vector<128xf32>
    %cst_10 = arith.constant 1.000000e+00 : f32
    %18 = vector.broadcast %cst_10 : f32 to vector<128xf32>
    %19 = arith.addf %18, %17 : vector<128xf32>
    %20 = arith.divf %18, %19 : vector<128xf32>
    %21 = vector.shape_cast %20 : vector<128xf32> to vector<1x128xf32>
    %c0_11 = arith.constant 0 : index
    %c0_12 = arith.constant 0 : index
    %22 = vector.load %arg6[%c0_11, %c0_12] : memref<1x128xf32, #tpu.memory_space<vmem>>, vector<1x128xf32>
    tpu.vector_store %arg6[%c0_11, %c0_12], %21 {strides = array<i32>} : memref<1x128xf32, #tpu.memory_space<vmem>>, vector<1x128xf32>,
    return
  }
  func.func @transform_0(%arg0: i32) -> (i32, i32) {
    %c0_i32 = arith.constant 0 : i32
    %c0_i32_0 = arith.constant 0 : i32
    return %arg0, %c0_i32 : i32, i32
  }
  func.func @transform_1(%arg0: i32) -> (i32, i32) {
    %c0_i32 = arith.constant 0 : i32
    %c0_i32_0 = arith.constant 0 : i32
    %c0_i32_1 = arith.constant 0 : i32
    return %c0_i32, %c0_i32_0 : i32, i32
  }
  func.func @transform_2(%arg0: i32) -> (i32, i32) {
    %c0_i32 = arith.constant 0 : i32
    %c0_i32_0 = arith.constant 0 : i32
    %c0_i32_1 = arith.constant 0 : i32
    return %c0_i32, %c0_i32_0 : i32, i32
  }
  func.func @transform_3(%arg0: i32) -> (i32, i32) {
    %c0_i32 = arith.constant 0 : i32
    %c0_i32_0 = arith.constant 0 : i32
    %c0_i32_1 = arith.constant 0 : i32
    return %c0_i32, %c0_i32_0 : i32, i32
  }
  func.func @transform_4(%arg0: i32) -> i32 {
    %c0_i32 = arith.constant 0 : i32
    %c0_i32_0 = arith.constant 0 : i32
    return %c0_i32 : i32
  }
  func.func @transform_5(%arg0: i32) -> (i32, i32) {
    %c0_i32 = arith.constant 0 : i32
    %c0_i32_0 = arith.constant 0 : i32
    return %arg0, %c0_i32 : i32, i32
  }
}

</mosaic_0001>

<llo_original>
// kernel: tpu_custom_call.1
$region0: #{tpu_custom_call.1}
  #allocation0 [shape = 'u32[]', space=smem, size = 0x4, offset = 0x4, fixed_abs, tag = 'smem constant byte address 0x4 - core index']
  #allocation1 [shape = 'u32[144,128]{1,0:T(1,128)}', space=vmem, size = 0x12000, scoped, tag = 'internal scratch']
  #allocation2 [shape = 'f32[1]{0:T(128)S(6)}', space=smem, size = 0x200, scoped, tag = 'scoped memory for tpu_custom_call.1']
  %s0 = inlined_call_operand.vmem [shape: f32[128,32], index: 0, kind: input, shape index: {}]
  %s1 = inlined_call_operand.vmem [shape: bf16[32,128], index: 1, kind: input, shape index: {}]
  %s2 = inlined_call_operand.vmem [shape: f32[1,128], index: 2, kind: input, shape index: {}]
  %s3 = inlined_call_operand.vmem [shape: f32[1,128], index: 3, kind: input, shape index: {}]
  %s4 = inlined_call_operand.<no memory space> [shape: f32[1], index: 4, kind: input, shape index: {}]
  %s5 = inlined_call_operand.hbm [shape: f32[1,128], index: 5, kind: output, shape index: {}]
  %s6 = sld [smem:[#allocation0]]
  $region30: #{tpu_custom_call.1} parent=0
    _
  %s8 = ssub.s32 1, %s6
  %s9 = scalar_select 0, %s8, %s6
  %10 = sst [smem:[#allocation2]] %s4
  $region1: #{tpu_custom_call.1} parent=0
    #allocation3 [shape = 'u8[512]{0}', space=vmem, size = 0x400, scoped, tag = 'output window, operand 0, single buffered']
    #allocation4 [shape = 's32[1]{0}', space=sflag, size = 0x4, scoped, tag = 'scoped memory for tpu_custom_call.1']
    %11 = vsyncpa [#allocation4], 0
    // Predicated region
    $region2: #{tpu_custom_call.1} parent=1 // pred_check
      _
    $region3: #{tpu_custom_call.1} parent=1 // pred_check_branch
      %13 = sbr.rel (0) target = $region5
    $region4: #{tpu_custom_call.1} parent=1 // pred_region
      _
    $region5: #{tpu_custom_call.1} parent=1 // pred_fallthru
      _
    // Predicated region
    $region6: #{tpu_custom_call.1} parent=1 // pred_check
      _
    $region7: #{tpu_custom_call.1} parent=1 // pred_check_branch
      %15 = sbr.rel (0) target = $region9
    $region8: #{tpu_custom_call.1} parent=1 // pred_region
      _
    $region9: #{tpu_custom_call.1} parent=1 // pred_fallthru
      _
    // Predicated region
    $region10: #{tpu_custom_call.1} parent=1 // pred_check
      _
    $region11: #{tpu_custom_call.1} parent=1 // pred_check_branch
      %17 = sbr.rel (0) target = $region13
    $region12: #{tpu_custom_call.1} parent=1 // pred_region
      _
    $region13: #{tpu_custom_call.1} parent=1 // pred_fallthru
      _
    // Predicated region
    $region14: #{tpu_custom_call.1} parent=1 // pred_check
      _
    $region15: #{tpu_custom_call.1} parent=1 // pred_check_branch
      %19 = sbr.rel (0) target = $region17
    $region16: #{tpu_custom_call.1} parent=1 // pred_region
      _
    $region17: #{tpu_custom_call.1} parent=1 // pred_fallthru
      _
    // Predicated region
    $region18: #{tpu_custom_call.1} parent=1 // pred_check
      _
    $region19: #{tpu_custom_call.1} parent=1 // pred_check_branch
      %21 = sbr.rel (0) target = $region21
    $region20: #{tpu_custom_call.1} parent=1 // pred_region
      _
    $region21: #{tpu_custom_call.1} parent=1 // pred_fallthru
      _
    %v23 = vld [vmem:[%s0] sm:$0xff]
    %v24 = vld [vmem:[%s0 + $0x8] sm:$0xff]
    %v25 = vld [vmem:[%s0 + $0x10] sm:$0xff]
    %v26 = vld [vmem:[%s0 + $0x18] sm:$0xff]
    %v27 = vld [vmem:[%s0 + $0x20] sm:$0xff]
    %v28 = vld [vmem:[%s0 + $0x28] sm:$0xff]
    %v29 = vld [vmem:[%s0 + $0x30] sm:$0xff]
    %v30 = vld [vmem:[%s0 + $0x38] sm:$0xff]
    %v31 = vld [vmem:[%s0 + $0x40] sm:$0xff]
    %v32 = vld [vmem:[%s0 + $0x48] sm:$0xff]
    %v33 = vld [vmem:[%s0 + $0x50] sm:$0xff]
    %v34 = vld [vmem:[%s0 + $0x58] sm:$0xff]
    %v35 = vld [vmem:[%s0 + $0x60] sm:$0xff]
    %v36 = vld [vmem:[%s0 + $0x68] sm:$0xff]
    %v37 = vld [vmem:[%s0 + $0x70] sm:$0xff]
    %v38 = vld [vmem:[%s0 + $0x78] sm:$0xff]
    %v39 = vpack.c.bf16 %v24, %v23
    %v40 = vpack.c.bf16 %v26, %v25
    %v41 = vpack.c.bf16 %v28, %v27
    %v42 = vpack.c.bf16 %v30, %v29
    %v43 = vpack.c.bf16 %v32, %v31
    %v44 = vpack.c.bf16 %v34, %v33
    %v45 = vpack.c.bf16 %v36, %v35
    %v46 = vpack.c.bf16 %v38, %v37
    %v47 = vld [vmem:[%s1] sm:$0xf]
    %v48 = vld [vmem:[%s1 + $0x4] sm:$0xf]
    %v49 = vld [vmem:[%s1 + $0x8] sm:$0xf]
    %v50 = vld [vmem:[%s1 + $0xc] sm:$0xf]
    %v51 = vld [vmem:[%s2] sm:$0x1]
    %v53 = vlaneseq
    %v54 = vshrl.u32 %v53, 7
    %v55 = vsub.s32 0, %v54
    %v56 = vrot.slane %v51, %v55
    %v62 = vunpack.c.l.b16 %v47
    %v63 = vunpack.c.l.b16 %v48
    %v64 = vunpack.c.l.b16 %v49
    %v65 = vunpack.c.l.b16 %v50
    %v66 = vpack.c.b16 %v63, %v62
    %v67 = vpack.c.b16 %v65, %v64
    %vm70 = vcmask 261120
    %v72 = vsel %vm70, %v39, 0
    %v75 = vsel %vm70, %v40, 0
    %v78 = vsel %vm70, %v41, 0
    %v81 = vsel %vm70, %v42, 0
    %v84 = vsel %vm70, %v43, 0
    %v87 = vsel %vm70, %v44, 0
    %v90 = vsel %vm70, %v45, 0
    %v93 = vsel %vm70, %v46, 0
    %95 = vmatprep.subr.bf16.mxu0 0
    %96 = vmatpush1.bf16.msra.mxu0 0
    %97 = vmatprep.subr.bf16.mxu0 0
    %98 = vmatpush1.bf16.msra.mxu0 0
    %99 = vmatprep.subr.bf16.mxu0 0
    %100 = vmatpush1.bf16.msra.mxu0 0
    %101 = vmatprep.subr.bf16.mxu0 0
    %102 = vmatpush1.bf16.msra.mxu0 0
    %103 = vmatprep.subr.bf16.mxu0 0
    %104 = vmatpush1.bf16.msra.mxu0 0
    %105 = vmatprep.subr.bf16.mxu0 0
    %106 = vmatpush1.bf16.msra.mxu0 0
    %107 = vmatprep.subr.bf16.mxu0 0
    %108 = vmatpush1.bf16.msra.mxu0 %v67
    %109 = vmatprep.subr.bf16.mxu0 0
    %110 = vmatpush1.bf16.msra.mxu0 %v66
    %111 = vmatprep.subr.bf16.mxu0 0
    %112 = vmatpush2.bf16.msra.mxu0 0
    %113 = vmatprep.subr.bf16.mxu0 0
    %114 = vmatpush2.bf16.msra.mxu0 0
    %115 = vmatprep.subr.bf16.mxu0 0
    %116 = vmatpush2.bf16.msra.mxu0 0
    %117 = vmatprep.subr.bf16.mxu0 0
    %118 = vmatpush2.bf16.msra.mxu0 0
    %119 = vmatprep.subr.bf16.mxu0 0
    %120 = vmatpush2.bf16.msra.mxu0 0
    %121 = vmatprep.subr.bf16.mxu0 0
    %122 = vmatpush2.bf16.msra.mxu0 0
    %123 = vmatprep.subr.bf16.mxu0 0
    %124 = vmatpush2.bf16.msra.mxu0 0
    %125 = vmatprep.subr.bf16.mxu0 0
    %126 = vmatpush2.bf16.msra.mxu0 0
    %127 = vmatprep.mubr.bf16.mxu0 0
    %128 = vmatmul.mubr.bf16.gmra.mxu0 %v72
    %v129 = vpop.f32.mrf.mxu0
    %v130 = vadd.f32 %v56, %v129
    %v131 = vpop.f32.mrf.mxu0
    %v132 = vpop.f32.mrf.mxu0
    %v133 = vadd.f32 %v56, %v132
    %v134 = vpop.f32.mrf.mxu0
    %135 = vmatprep.mubr.bf16.mxu0 0
    %136 = vmatmul.mubr.bf16.gmra.mxu0 %v75
    %v137 = vpop.f32.mrf.mxu0
    %v138 = vadd.f32 %v56, %v137
    %v139 = vpop.f32.mrf.mxu0
    %v140 = vpop.f32.mrf.mxu0
    %v141 = vadd.f32 %v56, %v140
    %v142 = vpop.f32.mrf.mxu0
    %143 = vmatprep.mubr.bf16.mxu0 0
    %144 = vmatmul.mubr.bf16.gmra.mxu0 %v78
    %v145 = vpop.f32.mrf.mxu0
    %v146 = vadd.f32 %v56, %v145
    %v147 = vpop.f32.mrf.mxu0
    %v148 = vpop.f32.mrf.mxu0
    %v149 = vadd.f32 %v56, %v148
    %v150 = vpop.f32.mrf.mxu0
    %151 = vmatprep.mubr.bf16.mxu0 0
    %152 = vmatmul.mubr.bf16.gmra.mxu0 %v81
    %v153 = vpop.f32.mrf.mxu0
    %v154 = vadd.f32 %v56, %v153
    %v155 = vpop.f32.mrf.mxu0
    %v156 = vpop.f32.mrf.mxu0
    %v157 = vadd.f32 %v56, %v156
    %v158 = vpop.f32.mrf.mxu0
    %159 = vmatprep.mubr.bf16.mxu0 0
    %160 = vmatmul.mubr.bf16.gmra.mxu0 %v84
    %v161 = vpop.f32.mrf.mxu0
    %v162 = vadd.f32 %v56, %v161
    %v163 = vpop.f32.mrf.mxu0
    %v164 = vpop.f32.mrf.mxu0
    %v165 = vadd.f32 %v56, %v164
    %v166 = vpop.f32.mrf.mxu0
    %167 = vmatprep.mubr.bf16.mxu0 0
    %168 = vmatmul.mubr.bf16.gmra.mxu0 %v87
    %v169 = vpop.f32.mrf.mxu0
    %v170 = vadd.f32 %v56, %v169
    %v171 = vpop.f32.mrf.mxu0
    %v172 = vpop.f32.mrf.mxu0
    %v173 = vadd.f32 %v56, %v172
    %v174 = vpop.f32.mrf.mxu0
    %175 = vmatprep.mubr.bf16.mxu0 0
    %176 = vmatmul.mubr.bf16.gmra.mxu0 %v90
    %v177 = vpop.f32.mrf.mxu0
    %v178 = vadd.f32 %v56, %v177
    %v179 = vpop.f32.mrf.mxu0
    %v180 = vpop.f32.mrf.mxu0
    %v181 = vadd.f32 %v56, %v180
    %v182 = vpop.f32.mrf.mxu0
    %183 = vmatprep.mubr.bf16.mxu0 0
    %184 = vmatmul.mubr.bf16.gmra.mxu0 %v93
    %v185 = vpop.f32.mrf.mxu0
    %v186 = vadd.f32 %v56, %v185
    %v187 = vpop.f32.mrf.mxu0
    %v188 = vpop.f32.mrf.mxu0
    %v189 = vadd.f32 %v56, %v188
    %v190 = vpop.f32.mrf.mxu0
    %191 = vdwg.mxu0
    %v192 = vmax.f32 %v130, 0.0
    %v193 = vmax.f32 %v133, 0.0
    %v194 = vmax.f32 %v138, 0.0
    %v195 = vmax.f32 %v141, 0.0
    %v196 = vmax.f32 %v146, 0.0
    %v197 = vmax.f32 %v149, 0.0
    %v198 = vmax.f32 %v154, 0.0
    %v199 = vmax.f32 %v157, 0.0
    %v200 = vmax.f32 %v162, 0.0
    %v201 = vmax.f32 %v165, 0.0
    %v202 = vmax.f32 %v170, 0.0
    %v203 = vmax.f32 %v173, 0.0
    %v204 = vmax.f32 %v178, 0.0
    %v205 = vmax.f32 %v181, 0.0
    %v206 = vmax.f32 %v186, 0.0
    %v207 = vmax.f32 %v189, 0.0
    %v208 = vld [vmem:[%s3] sm:$0x1]
    %v210 = vlaneseq
    %v211 = vshrl.u32 %v210, 7
    %v212 = vsub.s32 0, %v211
    %v213 = vrot.slane %v208, %v212
    %v215 = vmul.f32 %v192, %v213
    %v216 = vmul.f32 %v193, %v213
    %v217 = vmul.f32 %v194, %v213
    %v218 = vmul.f32 %v195, %v213
    %v219 = vmul.f32 %v196, %v213
    %v220 = vmul.f32 %v197, %v213
    %v221 = vmul.f32 %v198, %v213
    %v222 = vmul.f32 %v199, %v213
    %v223 = vmul.f32 %v200, %v213
    %v224 = vmul.f32 %v201, %v213
    %v225 = vmul.f32 %v202, %v213
    %v226 = vmul.f32 %v203, %v213
    %v227 = vmul.f32 %v204, %v213
    %v228 = vmul.f32 %v205, %v213
    %v229 = vmul.f32 %v206, %v213
    %v230 = vmul.f32 %v207, %v213
    %231 = vadd.xlane.f32.xlu0 %v215
    %v232 = vpop.xlane.xlu0 %231
    %233 = vadd.xlane.f32.xlu0 %v216
    %v234 = vpop.xlane.xlu0 %233
    %235 = vadd.xlane.f32.xlu0 %v217
    %v236 = vpop.xlane.xlu0 %235
    %237 = vadd.xlane.f32.xlu0 %v218
    %v238 = vpop.xlane.xlu0 %237
    %239 = vadd.xlane.f32.xlu0 %v219
    %v240 = vpop.xlane.xlu0 %239
    %241 = vadd.xlane.f32.xlu0 %v220
    %v242 = vpop.xlane.xlu0 %241
    %243 = vadd.xlane.f32.xlu0 %v221
    %v244 = vpop.xlane.xlu0 %243
    %245 = vadd.xlane.f32.xlu0 %v222
    %v246 = vpop.xlane.xlu0 %245
    %247 = vadd.xlane.f32.xlu0 %v223
    %v248 = vpop.xlane.xlu0 %247
    %249 = vadd.xlane.f32.xlu0 %v224
    %v250 = vpop.xlane.xlu0 %249
    %251 = vadd.xlane.f32.xlu0 %v225
    %v252 = vpop.xlane.xlu0 %251
    %253 = vadd.xlane.f32.xlu0 %v226
    %v254 = vpop.xlane.xlu0 %253
    %255 = vadd.xlane.f32.xlu0 %v227
    %v256 = vpop.xlane.xlu0 %255
    %257 = vadd.xlane.f32.xlu0 %v228
    %v258 = vpop.xlane.xlu0 %257
    %259 = vadd.xlane.f32.xlu0 %v229
    %v260 = vpop.xlane.xlu0 %259
    %261 = vadd.xlane.f32.xlu0 %v230
    %v262 = vpop.xlane.xlu0 %261
    %s263 = sld [smem:[#allocation2]]
    %v264 = vstv %s263
    %v265 = vadd.f32 %v232, %v264
    %v266 = vadd.f32 %v234, %v264
    %v267 = vadd.f32 %v236, %v264
    %v268 = vadd.f32 %v238, %v264
    %v269 = vadd.f32 %v240, %v264
    %v270 = vadd.f32 %v242, %v264
    %v271 = vadd.f32 %v244, %v264
    %v272 = vadd.f32 %v246, %v264
    %v273 = vadd.f32 %v248, %v264
    %v274 = vadd.f32 %v250, %v264
    %v275 = vadd.f32 %v252, %v264
    %v276 = vadd.f32 %v254, %v264
    %v277 = vadd.f32 %v256, %v264
    %v278 = vadd.f32 %v258, %v264
    %v279 = vadd.f32 %v260, %v264
    %v280 = vadd.f32 %v262, %v264
    %v281 = vxor.u32 %v265, 2147483648
    %v282 = vxor.u32 %v266, 2147483648
    %v283 = vxor.u32 %v267, 2147483648
    %v284 = vxor.u32 %v268, 2147483648
    %v285 = vxor.u32 %v269, 2147483648
    %v286 = vxor.u32 %v270, 2147483648
    %v287 = vxor.u32 %v271, 2147483648
    %v288 = vxor.u32 %v272, 2147483648
    %v289 = vxor.u32 %v273, 2147483648
    %v290 = vxor.u32 %v274, 2147483648
    %v291 = vxor.u32 %v275, 2147483648
    %v292 = vxor.u32 %v276, 2147483648
    %v293 = vxor.u32 %v277, 2147483648
    %v294 = vxor.u32 %v278, 2147483648
    %v295 = vxor.u32 %v279, 2147483648
    %v296 = vxor.u32 %v280, 2147483648
    %v297 = vmul.f32 %v281, 1.442695
    %v298 = vpow.pop %v297
    %v299 = vmul.f32 %v282, 1.442695
    %v300 = vpow.pop %v299
    %v301 = vmul.f32 %v283, 1.442695
    %v302 = vpow.pop %v301
    %v303 = vmul.f32 %v284, 1.442695
    %v304 = vpow.pop %v303
    %v305 = vmul.f32 %v285, 1.442695
    %v306 = vpow.pop %v305
    %v307 = vmul.f32 %v286, 1.442695
    %v308 = vpow.pop %v307
    %v309 = vmul.f32 %v287, 1.442695
    %v310 = vpow.pop %v309
    %v311 = vmul.f32 %v288, 1.442695
    %v312 = vpow.pop %v311
    %v313 = vmul.f32 %v289, 1.442695
    %v314 = vpow.pop %v313
    %v315 = vmul.f32 %v290, 1.442695
    %v316 = vpow.pop %v315
    %v317 = vmul.f32 %v291, 1.442695
    %v318 = vpow.pop %v317
    %v319 = vmul.f32 %v292, 1.442695
    %v320 = vpow.pop %v319
    %v321 = vmul.f32 %v293, 1.442695
    %v322 = vpow.pop %v321
    %v323 = vmul.f32 %v294, 1.442695
    %v324 = vpow.pop %v323
    %v325 = vmul.f32 %v295, 1.442695
    %v326 = vpow.pop %v325
    %v327 = vmul.f32 %v296, 1.442695
    %v328 = vpow.pop %v327
    %v329 = vadd.f32 %v298, 1.0
    %v330 = vadd.f32 %v300, 1.0
    %v331 = vadd.f32 %v302, 1.0
    %v332 = vadd.f32 %v304, 1.0
    %v333 = vadd.f32 %v306, 1.0
    %v334 = vadd.f32 %v308, 1.0
    %v335 = vadd.f32 %v310, 1.0
    %v336 = vadd.f32 %v312, 1.0
    %v337 = vadd.f32 %v314, 1.0
    %v338 = vadd.f32 %v316, 1.0
    %v339 = vadd.f32 %v318, 1.0
    %v340 = vadd.f32 %v320, 1.0
    %v341 = vadd.f32 %v322, 1.0
    %v342 = vadd.f32 %v324, 1.0
    %v343 = vadd.f32 %v326, 1.0
    %v344 = vadd.f32 %v328, 1.0
    %v345 = vrcp.pop %v329
    %v346 = vmul.f32 1.0, %v345
    %v347 = vrcp.pop %v330
    %v348 = vmul.f32 1.0, %v347
    %v349 = vrcp.pop %v331
    %v350 = vmul.f32 1.0, %v349
    %v351 = vrcp.pop %v332
    %v352 = vmul.f32 1.0, %v351
    %v353 = vrcp.pop %v333
    %v354 = vmul.f32 1.0, %v353
    %v355 = vrcp.pop %v334
    %v356 = vmul.f32 1.0, %v355
    %v357 = vrcp.pop %v335
    %v358 = vmul.f32 1.0, %v357
    %v359 = vrcp.pop %v336
    %v360 = vmul.f32 1.0, %v359
    %v361 = vrcp.pop %v337
    %v362 = vmul.f32 1.0, %v361
    %v363 = vrcp.pop %v338
    %v364 = vmul.f32 1.0, %v363
    %v365 = vrcp.pop %v339
    %v366 = vmul.f32 1.0, %v365
    %v367 = vrcp.pop %v340
    %v368 = vmul.f32 1.0, %v367
    %v369 = vrcp.pop %v341
    %v370 = vmul.f32 1.0, %v369
    %v371 = vrcp.pop %v342
    %v372 = vmul.f32 1.0, %v371
    %v373 = vrcp.pop %v343
    %v374 = vmul.f32 1.0, %v373
    %v375 = vrcp.pop %v344
    %v376 = vmul.f32 1.0, %v375
    %v393 = vlaneseq
    %v394 = vand.u32 %v393, 127
    %v395 = vlaneseq
    %v396 = vshrl.u32 %v395, 7
    %v397 = vsub.s32 %v394, %v396
    %v398 = vrot.slane %v346, %v397
    %v399 = vadd.s32 %v394, 4294967288
    %v400 = vlaneseq
    %v401 = vshrl.u32 %v400, 7
    %v402 = vsub.s32 %v399, %v401
    %v403 = vrot.slane %v348, %v402
    %vm404 = vcmask 130112
    %v405 = vsel %vm404, %v403, %v398
    %v406 = vadd.s32 %v394, 4294967280
    %v407 = vlaneseq
    %v408 = vshrl.u32 %v407, 7
    %v409 = vsub.s32 %v406, %v408
    %v410 = vrot.slane %v350, %v409
    %vm411 = vcmask 195712
    %v412 = vsel %vm411, %v410, %v405
    %v413 = vadd.s32 %v394, 4294967272
    %v414 = vlaneseq
    %v415 = vshrl.u32 %v414, 7
    %v416 = vsub.s32 %v413, %v415
    %v417 = vrot.slane %v352, %v416
    %vm418 = vcmask 261312
    %v419 = vsel %vm418, %v417, %v412
    %v420 = vadd.s32 %v394, 4294967264
    %v421 = vlaneseq
    %v422 = vshrl.u32 %v421, 7
    %v423 = vsub.s32 %v420, %v422
    %v424 = vrot.slane %v354, %v423
    %vm425 = vcmask 326912
    %v426 = vsel %vm425, %v424, %v419
    %v427 = vadd.s32 %v394, 4294967256
    %v428 = vlaneseq
    %v429 = vshrl.u32 %v428, 7
    %v430 = vsub.s32 %v427, %v429
    %v431 = vrot.slane %v356, %v430
    %vm432 = vcmask 392512
    %v433 = vsel %vm432, %v431, %v426
    %v434 = vadd.s32 %v394, 4294967248
    %v435 = vlaneseq
    %v436 = vshrl.u32 %v435, 7
    %v437 = vsub.s32 %v434, %v436
    %v438 = vrot.slane %v358, %v437
    %vm439 = vcmask 458112
    %v440 = vsel %vm439, %v438, %v433
    %v441 = vadd.s32 %v394, 4294967240
    %v442 = vlaneseq
    %v443 = vshrl.u32 %v442, 7
    %v444 = vsub.s32 %v441, %v443
    %v445 = vrot.slane %v360, %v444
    %vm446 = vcmask 523712
    %v447 = vsel %vm446, %v445, %v440
    %v448 = vadd.s32 %v394, 4294967232
    %v449 = vlaneseq
    %v450 = vshrl.u32 %v449, 7
    %v451 = vsub.s32 %v448, %v450
    %v452 = vrot.slane %v362, %v451
    %vm453 = vcmask 589312
    %v454 = vsel %vm453, %v452, %v447
    %v455 = vadd.s32 %v394, 4294967224
    %v456 = vlaneseq
    %v457 = vshrl.u32 %v456, 7
    %v458 = vsub.s32 %v455, %v457
    %v459 = vrot.slane %v364, %v458
    %vm460 = vcmask 654912
    %v461 = vsel %vm460, %v459, %v454
    %v462 = vadd.s32 %v394, 4294967216
    %v463 = vlaneseq
    %v464 = vshrl.u32 %v463, 7
    %v465 = vsub.s32 %v462, %v464
    %v466 = vrot.slane %v366, %v465
    %vm467 = vcmask 720512
    %v468 = vsel %vm467, %v466, %v461
    %v469 = vadd.s32 %v394, 4294967208
    %v470 = vlaneseq
    %v471 = vshrl.u32 %v470, 7
    %v472 = vsub.s32 %v469, %v471
    %v473 = vrot.slane %v368, %v472
    %vm474 = vcmask 786112
    %v475 = vsel %vm474, %v473, %v468
    %v476 = vadd.s32 %v394, 4294967200
    %v477 = vlaneseq
    %v478 = vshrl.u32 %v477, 7
    %v479 = vsub.s32 %v476, %v478
    %v480 = vrot.slane %v370, %v479
    %vm481 = vcmask 851712
    %v482 = vsel %vm481, %v480, %v475
    %v483 = vadd.s32 %v394, 4294967192
    %v484 = vlaneseq
    %v485 = vshrl.u32 %v484, 7
    %v486 = vsub.s32 %v483, %v485
    %v487 = vrot.slane %v372, %v486
    %vm488 = vcmask 917312
    %v489 = vsel %vm488, %v487, %v482
    %v490 = vadd.s32 %v394, 4294967184
    %v491 = vlaneseq
    %v492 = vshrl.u32 %v491, 7
    %v493 = vsub.s32 %v490, %v492
    %v494 = vrot.slane %v374, %v493
    %vm495 = vcmask 982912
    %v496 = vsel %vm495, %v494, %v489
    %v497 = vadd.s32 %v394, 4294967176
    %v498 = vlaneseq
    %v499 = vshrl.u32 %v498, 7
    %v500 = vsub.s32 %v497, %v499
    %v501 = vrot.slane %v376, %v500
    %vm502 = vcmask 1048512
    %v503 = vsel %vm502, %v501, %v496
    %505 = vst [vmem:[#allocation3] sm:$0x1] %v503
    // Predicated region
    $region22: #{tpu_custom_call.1} parent=1 // pred_check
      _
    $region23: #{tpu_custom_call.1} parent=1 // pred_check_branch
      %507 = sbr.rel (0) target = $region25
    $region24: #{tpu_custom_call.1} parent=1 // pred_region
      %s509 = ssub.s32 16, 16
      %510 = vsyncadd [#allocation4], %s509
      %s512 = sshll.u32 [#allocation3], 4
      %s513 = int_to_ptr.vmem [resolvable:$true] %s512
      %515 = dma.vmem_to_hbm [thread:$0]  %s513, 16, %s5, [#allocation4]
    $region25: #{tpu_custom_call.1} parent=1 // pred_fallthru
      _
    // Predicated region
    $region26: #{tpu_custom_call.1} parent=1 // pred_check
      _
    $region27: #{tpu_custom_call.1} parent=1 // pred_check_branch
      %517 = sbr.rel (0) target = $region29
    $region28: #{tpu_custom_call.1} parent=1 // pred_region
      %518 = dma.done [#allocation4], 16
    $region29: #{tpu_custom_call.1} parent=1 // pred_fallthru
      _
    %519 = vsyncpa [#allocation4], 1

</llo_original>
